<compile_context>
chip_gen: v5e
topology: v5e:2x2
jax: 0.10.0
libtpu: 0.0.40
codegen_flags: <defaults>
</compile_context>

<pallas_src>
import functools

import numpy as np
import jax
import jax.numpy as jnp
from jax.experimental import pallas as pl
from jax.experimental.pallas import tpu as pltpu


def _round_up(x, m):
    return (x + m - 1) // m * m


def _has_two_tensorcores():
    """v7x has 2 TensorCores per chip; v5e/v6e have 1."""
    try:
        kind = jax.devices()[0].device_kind.lower()
    except Exception:
        return False
    return ("v7" in kind) or ("tpu7" in kind) or ("7x" in kind)


# ---------------------------------------------------------------------------
# Fused Pallas kernel: conv (gathered, k-major rows) + bias + squash
# ---------------------------------------------------------------------------
def _primary_capsule_kernel(pg_ref, wg_ref, bias_ref, out_ref, *, approx_reciprocal):
    # pg_ref  : [K*dim_caps, C] bf16  gathered im2col patch values, row r = k*dim_caps + d
    # wg_ref  : [K*dim_caps, C] bf16  matching gathered conv weights (batch invariant)
    # bias_ref: [dim_caps,   C] f32   conv bias in capsule layout (0 in padded columns)
    # out_ref : [dim_caps,   C] f32   squashed capsules (component = sublane, capsule = lane)
    dim_caps = bias_ref.shape[0]
    n_k = pg_ref.shape[0] // dim_caps

    # Tile-aligned multiply-accumulate over patch elements.  Static slices, bf16 -> f32
    # upcast on load (v5e has no bf16 VALU), exact f32 accumulation; ~3 live vregs.
    caps = bias_ref[...]
    for k in range(n_k):
        p = pg_ref[k * dim_caps:(k + 1) * dim_caps, :].astype(jnp.float32)
        w = wg_ref[k * dim_caps:(k + 1) * dim_caps, :].astype(jnp.float32)
        caps = caps + p * w

    # Squash: scale = ||v||^2 / (1 + ||v||^2) / (||v|| + 1e-8); sublane reduce per capsule.
    sq = jnp.sum(caps * caps, axis=0, keepdims=True)             # [1, C]
    denom = (1.0 + sq) * (jnp.sqrt(sq) + 1e-8)
    if approx_reciprocal:
        scale = sq * pl.reciprocal(denom, approx=True)           # 1 sqrt + 1 EUP reciprocal
    else:
        scale = sq / denom                                       # exact fallback path
    out_ref[...] = scale * caps                                  # lane-dense, unmasked store


# ---------------------------------------------------------------------------
# Host glue
# ---------------------------------------------------------------------------
def _im2col_nchw(x, kh, kw, stride, padding):
    """x: [B, C, H, W] -> patches [B, OH*OW, C*KH*KW]; K ordered (c, kh, kw) to match
    weight.reshape(out_c, -1)."""
    if padding > 0:
        x = jnp.pad(x, ((0, 0), (0, 0), (padding, padding), (padding, padding)))
    B, C, H, W = x.shape
    oh = (H - kh) // stride + 1
    ow = (W - kw) // stride + 1
    cols = []
    for i in range(kh):
        for j in range(kw):
            cols.append(x[:, :, i:i + stride * oh:stride, j:j + stride * ow:stride])
    p = jnp.stack(cols, axis=2)                                   # [B, C, kh*kw, oh, ow]
    p = p.reshape(B, C * kh * kw, oh, ow)                         # k = c*(kh*kw) + i*kw + j
    p = p.transpose(0, 2, 3, 1).reshape(B, oh * ow, C * kh * kw)  # [B, S, K]
    return p, oh, ow


def make_primary_capsule(weight, bias, dim_caps, *, stride=1, padding=0,
                         batch, input_hw, fold_batch=None, approx_reciprocal=True):
    """Precompute all batch-invariant glue once; return a jitted forward(x)."""
    out_c, in_c, kh, kw = weight.shape
    H, W = input_hw
    K = in_c * kh * kw
    oh = (H + 2 * padding - kh) // stride + 1
    ow = (W + 2 * padding - kw) // stride + 1
    S = oh * ow
    F = out_c * S
    assert F % dim_caps == 0, (F, dim_caps)
    num_caps = F // dim_caps
    rows = K * dim_caps

    if fold_batch is None:
        # Single-TC chips: fold batch into lanes (one grid step).  v7x: keep parallel grid.
        fold_batch = not _has_two_tensorcores()

    # Static capsule-coordinate -> conv-coordinate maps.  NCHW flat conv index
    # f = c*S + s = n*dim_caps + d  (exactly torch's contiguous .view()).
    d_idx = np.arange(dim_caps)[:, None]
    n_idx = np.arange(num_caps)[None, :]
    f_dn = n_idx * dim_caps + d_idx                               # [dim_caps, num_caps]
    c_dn = f_dn // S
    s_dn = f_dn % S                                               # static gather indices

    # Batch-invariant gathered weights / bias in the k-major capsule layout (built once).
    w2 = np.asarray(jax.device_get(weight), dtype=np.float32).reshape(out_c, K)
    wg = w2[c_dn]                                                 # [dim_caps, num_caps, K]
    wg = np.transpose(wg, (2, 0, 1)).reshape(rows, num_caps)      # row = k*dim_caps + d
    bg = np.asarray(jax.device_get(bias), dtype=np.float32)[c_dn]  # [dim_caps, num_caps]

    if fold_batch:
        cols = batch * num_caps                                   # column = b*num_caps + n
        wg = np.tile(wg, (1, batch))
        bg = np.tile(bg, (1, batch))
    else:
        cols = num_caps
    cpad = _round_up(cols, 128)                                   # lane-dense blocks
    wg = np.pad(wg, ((0, 0), (0, cpad - cols)))
    bg = np.pad(bg, ((0, 0), (0, cpad - cols)))                   # zero bias in pad columns

    wg_dev = jnp.asarray(wg, dtype=jnp.bfloat16)
    bg_dev = jnp.asarray(bg, dtype=jnp.float32)

    kernel = functools.partial(_primary_capsule_kernel,
                               approx_reciprocal=approx_reciprocal)

    if fold_batch:
        grid = (1,)
        pg_spec = pl.BlockSpec((rows, cpad), lambda g: (0, 0))
        out_spec = pl.BlockSpec((dim_caps, cpad), lambda g: (0, 0))
        out_rows_total = dim_caps
        dim_sem = ("arbitrary",)
    else:
        grid = (batch,)
        pg_spec = pl.BlockSpec((rows, cpad), lambda b: (b, 0))
        out_spec = pl.BlockSpec((dim_caps, cpad), lambda b: (b, 0))
        out_rows_total = batch * dim_caps
        dim_sem = ("parallel",)

    call = pl.pallas_call(
        kernel,
        out_shape=jax.ShapeDtypeStruct((out_rows_total, cpad), jnp.float32),
        grid=grid,
        in_specs=[
            pg_spec,
            # TODO(synk): batch-invariant operands could use pipeline_mode=pl.Buffered(1)
            # to drop the second VMEM buffer; left at default depth for compile robustness.
            pl.BlockSpec((rows, cpad), lambda b: (0, 0)),         # gathered weights
            pl.BlockSpec((dim_caps, cpad), lambda b: (0, 0)),     # bias in capsule layout
        ],
        out_specs=out_spec,
        compiler_params=pltpu.CompilerParams(dimension_semantics=dim_sem),
    )

    @jax.jit
    def forward(x):
        assert x.shape[0] == batch and x.shape[2:] == (H, W), x.shape
        patches, _, _ = _im2col_nchw(x, kh, kw, stride, padding)  # [B, S, K]
        # TODO(synk): this gather duplicates im2col data out_c x; at production sizes
        # stream patches from HBM once (PrefetchScalarGridSpec / tiled matmul epilogue).
        pg = patches.astype(jnp.bfloat16)[:, s_dn, :]             # [B, dim_caps, num_caps, K]
        pg = pg.transpose(0, 3, 1, 2)                             # [B, K, dim_caps, num_caps]
        if fold_batch:
            pg = pg.transpose(1, 2, 0, 3).reshape(rows, batch * num_caps)
            pg = jnp.pad(pg, ((0, 0), (0, cpad - batch * num_caps)))
            out = call(pg, wg_dev, bg_dev)                        # [dim_caps, cpad]
            out = out[:, :batch * num_caps].reshape(dim_caps, batch, num_caps)
            return out.transpose(1, 2, 0)                         # [B, num_caps, dim_caps]
        else:
            pg = pg.reshape(batch * rows, num_caps)
            pg = jnp.pad(pg, ((0, 0), (0, cpad - num_caps)))
            out = call(pg, wg_dev, bg_dev)                        # [B*dim_caps, cpad]
            out = out.reshape(batch, dim_caps, cpad)[:, :, :num_caps]
            return out.transpose(0, 2, 1)                         # [B, num_caps, dim_caps]

    return forward


# ---------------------------------------------------------------------------
# Main
# ---------------------------------------------------------------------------
if __name__ == "__main__":
    in_channels = 4
    out_channels = 8
    dim_caps = 8
    kernel_size = 3
    stride = 2
    padding = 0
    batch, spatial = 2, 16

    key = jax.random.PRNGKey(0)
    kx, kw_, kb = jax.random.split(key, 3)

    x = jax.random.normal(kx, (batch, in_channels, spatial, spatial), dtype=jnp.float32)

    fan_in = in_channels * kernel_size * kernel_size
    bound = 1.0 / (fan_in ** 0.5)
    weight = jax.random.uniform(
        kw_, (out_channels, in_channels, kernel_size, kernel_size),
        minval=-bound, maxval=bound, dtype=jnp.float32)
    bias = jax.random.uniform(
        kb, (out_channels,), minval=-bound, maxval=bound, dtype=jnp.float32)

    forward = make_primary_capsule(
        weight, bias, dim_caps, stride=stride, padding=padding,
        batch=batch, input_hw=(spatial, spatial))

    out = jax.block_until_ready(forward(x))

    # Shape / finiteness checks: [B, num_caps, dim_caps]
    oh = (spatial - kernel_size) // stride + 1
    num_caps = out_channels * oh * oh // dim_caps
    assert out.shape == (batch, num_caps, dim_caps), out.shape
    assert bool(jnp.all(jnp.isfinite(out)))

    # Pure-JAX reference (XLA conv + torch-style view + squash).
    ref_conv = jax.lax.conv_general_dilated(
        x, weight, window_strides=(stride, stride),
        padding=[(padding, padding), (padding, padding)],
        dimension_numbers=("NCHW", "OIHW", "NCHW"),
    ) + bias[None, :, None, None]
    ref_caps = ref_conv.reshape(batch, -1, dim_caps)
    ref_sq = jnp.sum(ref_caps * ref_caps, axis=-1, keepdims=True)
    ref_out = ref_caps * (ref_sq / (1.0 + ref_sq) / (jnp.sqrt(ref_sq) + 1e-8))

    max_err = float(jnp.max(jnp.abs(out - ref_out)))
    # bf16 operand storage + approx EUP reciprocal -> slightly looser tolerance than pure f32.
    assert bool(jnp.allclose(out, ref_out, rtol=2e-2, atol=2e-3)), max_err
    assert bool(jnp.all(jnp.linalg.norm(out, axis=-1) < 1.0 + 1e-2))

    print("KERNEL_OK")
</pallas_src>

<mosaic_0001>
module attributes {stable_mosaic.version = 11 : i64} {
  func.func @_primary_capsule_kernel(%arg0: i32, %arg1: memref<288x128xbf16, #tpu.memory_space<vmem>>, %arg2: memref<288x128xbf16, #tpu.memory_space<vmem>>, %arg3: memref<8x128xf32, #tpu.memory_space<vmem>>, %arg4: memref<8x128xf32, #tpu.memory_space<vmem>>) attributes {dimension_semantics = [#tpu.dimension_semantics<arbitrary>], iteration_bounds = array<i64: 1>, scalar_prefetch = 0 : i64, scratch_operands = 0 : i64, tpu.core_type = #tpu.core_type<tc>, window_params = [{pipeline_mode = #tpu.pipeline_mode<synchronous>, transform_indices = @transform_0, window_bounds = array<i64: 288, 128>}, {pipeline_mode = #tpu.pipeline_mode<synchronous>, transform_indices = @transform_1, window_bounds = array<i64: 288, 128>}, {pipeline_mode = #tpu.pipeline_mode<synchronous>, transform_indices = @transform_2, window_bounds = array<i64: 8, 128>}, {pipeline_mode = #tpu.pipeline_mode<synchronous>, transform_indices = @transform_3, window_bounds = array<i64: 8, 128>}]} {
    %c0 = arith.constant 0 : index
    %c0_0 = arith.constant 0 : index
    %0 = vector.load %arg3[%c0, %c0_0] : memref<8x128xf32, #tpu.memory_space<vmem>>, vector<8x128xf32>
    %c0_1 = arith.constant 0 : index
    %c0_2 = arith.constant 0 : index
    %1 = vector.load %arg1[%c0_1, %c0_2] : memref<288x128xbf16, #tpu.memory_space<vmem>>, vector<8x128xbf16>
    %2 = arith.extf %1 : vector<8x128xbf16> to vector<8x128xf32>
    %c0_3 = arith.constant 0 : index
    %c0_4 = arith.constant 0 : index
    %3 = vector.load %arg2[%c0_3, %c0_4] : memref<288x128xbf16, #tpu.memory_space<vmem>>, vector<8x128xbf16>
    %4 = arith.extf %3 : vector<8x128xbf16> to vector<8x128xf32>
    %5 = arith.mulf %2, %4 : vector<8x128xf32>
    %6 = arith.addf %0, %5 : vector<8x128xf32>
    %c8 = arith.constant 8 : index
    %c0_5 = arith.constant 0 : index
    %7 = vector.load %arg1[%c8, %c0_5] : memref<288x128xbf16, #tpu.memory_space<vmem>>, vector<8x128xbf16>
    %8 = arith.extf %7 : vector<8x128xbf16> to vector<8x128xf32>
    %c8_6 = arith.constant 8 : index
    %c0_7 = arith.constant 0 : index
    %9 = vector.load %arg2[%c8_6, %c0_7] : memref<288x128xbf16, #tpu.memory_space<vmem>>, vector<8x128xbf16>
    %10 = arith.extf %9 : vector<8x128xbf16> to vector<8x128xf32>
    %11 = arith.mulf %8, %10 : vector<8x128xf32>
    %12 = arith.addf %6, %11 : vector<8x128xf32>
    %c16 = arith.constant 16 : index
    %c0_8 = arith.constant 0 : index
    %13 = vector.load %arg1[%c16, %c0_8] : memref<288x128xbf16, #tpu.memory_space<vmem>>, vector<8x128xbf16>
    %14 = arith.extf %13 : vector<8x128xbf16> to vector<8x128xf32>
    %c16_9 = arith.constant 16 : index
    %c0_10 = arith.constant 0 : index
    %15 = vector.load %arg2[%c16_9, %c0_10] : memref<288x128xbf16, #tpu.memory_space<vmem>>, vector<8x128xbf16>
    %16 = arith.extf %15 : vector<8x128xbf16> to vector<8x128xf32>
    %17 = arith.mulf %14, %16 : vector<8x128xf32>
    %18 = arith.addf %12, %17 : vector<8x128xf32>
    %c24 = arith.constant 24 : index
    %c0_11 = arith.constant 0 : index
    %19 = vector.load %arg1[%c24, %c0_11] : memref<288x128xbf16, #tpu.memory_space<vmem>>, vector<8x128xbf16>
    %20 = arith.extf %19 : vector<8x128xbf16> to vector<8x128xf32>
    %c24_12 = arith.constant 24 : index
    %c0_13 = arith.constant 0 : index
    %21 = vector.load %arg2[%c24_12, %c0_13] : memref<288x128xbf16, #tpu.memory_space<vmem>>, vector<8x128xbf16>
    %22 = arith.extf %21 : vector<8x128xbf16> to vector<8x128xf32>
    %23 = arith.mulf %20, %22 : vector<8x128xf32>
    %24 = arith.addf %18, %23 : vector<8x128xf32>
    %c32 = arith.constant 32 : index
    %c0_14 = arith.constant 0 : index
    %25 = vector.load %arg1[%c32, %c0_14] : memref<288x128xbf16, #tpu.memory_space<vmem>>, vector<8x128xbf16>
    %26 = arith.extf %25 : vector<8x128xbf16> to vector<8x128xf32>
    %c32_15 = arith.constant 32 : index
    %c0_16 = arith.constant 0 : index
    %27 = vector.load %arg2[%c32_15, %c0_16] : memref<288x128xbf16, #tpu.memory_space<vmem>>, vector<8x128xbf16>
    %28 = arith.extf %27 : vector<8x128xbf16> to vector<8x128xf32>
    %29 = arith.mulf %26, %28 : vector<8x128xf32>
    %30 = arith.addf %24, %29 : vector<8x128xf32>
    %c40 = arith.constant 40 : index
    %c0_17 = arith.constant 0 : index
    %31 = vector.load %arg1[%c40, %c0_17] : memref<288x128xbf16, #tpu.memory_space<vmem>>, vector<8x128xbf16>
    %32 = arith.extf %31 : vector<8x128xbf16> to vector<8x128xf32>
    %c40_18 = arith.constant 40 : index
    %c0_19 = arith.constant 0 : index
    %33 = vector.load %arg2[%c40_18, %c0_19] : memref<288x128xbf16, #tpu.memory_space<vmem>>, vector<8x128xbf16>
    %34 = arith.extf %33 : vector<8x128xbf16> to vector<8x128xf32>
    %35 = arith.mulf %32, %34 : vector<8x128xf32>
    %36 = arith.addf %30, %35 : vector<8x128xf32>
    %c48 = arith.constant 48 : index
    %c0_20 = arith.constant 0 : index
    %37 = vector.load %arg1[%c48, %c0_20] : memref<288x128xbf16, #tpu.memory_space<vmem>>, vector<8x128xbf16>
    %38 = arith.extf %37 : vector<8x128xbf16> to vector<8x128xf32>
    %c48_21 = arith.constant 48 : index
    %c0_22 = arith.constant 0 : index
    %39 = vector.load %arg2[%c48_21, %c0_22] : memref<288x128xbf16, #tpu.memory_space<vmem>>, vector<8x128xbf16>
    %40 = arith.extf %39 : vector<8x128xbf16> to vector<8x128xf32>
    %41 = arith.mulf %38, %40 : vector<8x128xf32>
    %42 = arith.addf %36, %41 : vector<8x128xf32>
    %c56 = arith.constant 56 : index
    %c0_23 = arith.constant 0 : index
    %43 = vector.load %arg1[%c56, %c0_23] : memref<288x128xbf16, #tpu.memory_space<vmem>>, vector<8x128xbf16>
    %44 = arith.extf %43 : vector<8x128xbf16> to vector<8x128xf32>
    %c56_24 = arith.constant 56 : index
    %c0_25 = arith.constant 0 : index
    %45 = vector.load %arg2[%c56_24, %c0_25] : memref<288x128xbf16, #tpu.memory_space<vmem>>, vector<8x128xbf16>
    %46 = arith.extf %45 : vector<8x128xbf16> to vector<8x128xf32>
    %47 = arith.mulf %44, %46 : vector<8x128xf32>
    %48 = arith.addf %42, %47 : vector<8x128xf32>
    %c64 = arith.constant 64 : index
    %c0_26 = arith.constant 0 : index
    %49 = vector.load %arg1[%c64, %c0_26] : memref<288x128xbf16, #tpu.memory_space<vmem>>, vector<8x128xbf16>
    %50 = arith.extf %49 : vector<8x128xbf16> to vector<8x128xf32>
    %c64_27 = arith.constant 64 : index
    %c0_28 = arith.constant 0 : index
    %51 = vector.load %arg2[%c64_27, %c0_28] : memref<288x128xbf16, #tpu.memory_space<vmem>>, vector<8x128xbf16>
    %52 = arith.extf %51 : vector<8x128xbf16> to vector<8x128xf32>
    %53 = arith.mulf %50, %52 : vector<8x128xf32>
    %54 = arith.addf %48, %53 : vector<8x128xf32>
    %c72 = arith.constant 72 : index
    %c0_29 = arith.constant 0 : index
    %55 = vector.load %arg1[%c72, %c0_29] : memref<288x128xbf16, #tpu.memory_space<vmem>>, vector<8x128xbf16>
    %56 = arith.extf %55 : vector<8x128xbf16> to vector<8x128xf32>
    %c72_30 = arith.constant 72 : index
    %c0_31 = arith.constant 0 : index
    %57 = vector.load %arg2[%c72_30, %c0_31] : memref<288x128xbf16, #tpu.memory_space<vmem>>, vector<8x128xbf16>
    %58 = arith.extf %57 : vector<8x128xbf16> to vector<8x128xf32>
    %59 = arith.mulf %56, %58 : vector<8x128xf32>
    %60 = arith.addf %54, %59 : vector<8x128xf32>
    %c80 = arith.constant 80 : index
    %c0_32 = arith.constant 0 : index
    %61 = vector.load %arg1[%c80, %c0_32] : memref<288x128xbf16, #tpu.memory_space<vmem>>, vector<8x128xbf16>
    %62 = arith.extf %61 : vector<8x128xbf16> to vector<8x128xf32>
    %c80_33 = arith.constant 80 : index
    %c0_34 = arith.constant 0 : index
    %63 = vector.load %arg2[%c80_33, %c0_34] : memref<288x128xbf16, #tpu.memory_space<vmem>>, vector<8x128xbf16>
    %64 = arith.extf %63 : vector<8x128xbf16> to vector<8x128xf32>
    %65 = arith.mulf %62, %64 : vector<8x128xf32>
    %66 = arith.addf %60, %65 : vector<8x128xf32>
    %c88 = arith.constant 88 : index
    %c0_35 = arith.constant 0 : index
    %67 = vector.load %arg1[%c88, %c0_35] : memref<288x128xbf16, #tpu.memory_space<vmem>>, vector<8x128xbf16>
    %68 = arith.extf %67 : vector<8x128xbf16> to vector<8x128xf32>
    %c88_36 = arith.constant 88 : index
    %c0_37 = arith.constant 0 : index
    %69 = vector.load %arg2[%c88_36, %c0_37] : memref<288x128xbf16, #tpu.memory_space<vmem>>, vector<8x128xbf16>
    %70 = arith.extf %69 : vector<8x128xbf16> to vector<8x128xf32>
    %71 = arith.mulf %68, %70 : vector<8x128xf32>
    %72 = arith.addf %66, %71 : vector<8x128xf32>
    %c96 = arith.constant 96 : index
    %c0_38 = arith.constant 0 : index
    %73 = vector.load %arg1[%c96, %c0_38] : memref<288x128xbf16, #tpu.memory_space<vmem>>, vector<8x128xbf16>
    %74 = arith.extf %73 : vector<8x128xbf16> to vector<8x128xf32>
    %c96_39 = arith.constant 96 : index
    %c0_40 = arith.constant 0 : index
    %75 = vector.load %arg2[%c96_39, %c0_40] : memref<288x128xbf16, #tpu.memory_space<vmem>>, vector<8x128xbf16>
    %76 = arith.extf %75 : vector<8x128xbf16> to vector<8x128xf32>
    %77 = arith.mulf %74, %76 : vector<8x128xf32>
    %78 = arith.addf %72, %77 : vector<8x128xf32>
    %c104 = arith.constant 104 : index
    %c0_41 = arith.constant 0 : index
    %79 = vector.load %arg1[%c104, %c0_41] : memref<288x128xbf16, #tpu.memory_space<vmem>>, vector<8x128xbf16>
    %80 = arith.extf %79 : vector<8x128xbf16> to vector<8x128xf32>
    %c104_42 = arith.constant 104 : index
    %c0_43 = arith.constant 0 : index
    %81 = vector.load %arg2[%c104_42, %c0_43] : memref<288x128xbf16, #tpu.memory_space<vmem>>, vector<8x128xbf16>
    %82 = arith.extf %81 : vector<8x128xbf16> to vector<8x128xf32>
    %83 = arith.mulf %80, %82 : vector<8x128xf32>
    %84 = arith.addf %78, %83 : vector<8x128xf32>
    %c112 = arith.constant 112 : index
    %c0_44 = arith.constant 0 : index
    %85 = vector.load %arg1[%c112, %c0_44] : memref<288x128xbf16, #tpu.memory_space<vmem>>, vector<8x128xbf16>
    %86 = arith.extf %85 : vector<8x128xbf16> to vector<8x128xf32>
    %c112_45 = arith.constant 112 : index
    %c0_46 = arith.constant 0 : index
    %87 = vector.load %arg2[%c112_45, %c0_46] : memref<288x128xbf16, #tpu.memory_space<vmem>>, vector<8x128xbf16>
    %88 = arith.extf %87 : vector<8x128xbf16> to vector<8x128xf32>
    %89 = arith.mulf %86, %88 : vector<8x128xf32>
    %90 = arith.addf %84, %89 : vector<8x128xf32>
    %c120 = arith.constant 120 : index
    %c0_47 = arith.constant 0 : index
    %91 = vector.load %arg1[%c120, %c0_47] : memref<288x128xbf16, #tpu.memory_space<vmem>>, vector<8x128xbf16>
    %92 = arith.extf %91 : vector<8x128xbf16> to vector<8x128xf32>
    %c120_48 = arith.constant 120 : index
    %c0_49 = arith.constant 0 : index
    %93 = vector.load %arg2[%c120_48, %c0_49] : memref<288x128xbf16, #tpu.memory_space<vmem>>, vector<8x128xbf16>
    %94 = arith.extf %93 : vector<8x128xbf16> to vector<8x128xf32>
    %95 = arith.mulf %92, %94 : vector<8x128xf32>
    %96 = arith.addf %90, %95 : vector<8x128xf32>
    %c128 = arith.constant 128 : index
    %c0_50 = arith.constant 0 : index
    %97 = vector.load %arg1[%c128, %c0_50] : memref<288x128xbf16, #tpu.memory_space<vmem>>, vector<8x128xbf16>
    %98 = arith.extf %97 : vector<8x128xbf16> to vector<8x128xf32>
    %c128_51 = arith.constant 128 : index
    %c0_52 = arith.constant 0 : index
    %99 = vector.load %arg2[%c128_51, %c0_52] : memref<288x128xbf16, #tpu.memory_space<vmem>>, vector<8x128xbf16>
    %100 = arith.extf %99 : vector<8x128xbf16> to vector<8x128xf32>
    %101 = arith.mulf %98, %100 : vector<8x128xf32>
    %102 = arith.addf %96, %101 : vector<8x128xf32>
    %c136 = arith.constant 136 : index
    %c0_53 = arith.constant 0 : index
    %103 = vector.load %arg1[%c136, %c0_53] : memref<288x128xbf16, #tpu.memory_space<vmem>>, vector<8x128xbf16>
    %104 = arith.extf %103 : vector<8x128xbf16> to vector<8x128xf32>
    %c136_54 = arith.constant 136 : index
    %c0_55 = arith.constant 0 : index
    %105 = vector.load %arg2[%c136_54, %c0_55] : memref<288x128xbf16, #tpu.memory_space<vmem>>, vector<8x128xbf16>
    %106 = arith.extf %105 : vector<8x128xbf16> to vector<8x128xf32>
    %107 = arith.mulf %104, %106 : vector<8x128xf32>
    %108 = arith.addf %102, %107 : vector<8x128xf32>
    %c144 = arith.constant 144 : index
    %c0_56 = arith.constant 0 : index
    %109 = vector.load %arg1[%c144, %c0_56] : memref<288x128xbf16, #tpu.memory_space<vmem>>, vector<8x128xbf16>
    %110 = arith.extf %109 : vector<8x128xbf16> to vector<8x128xf32>
    %c144_57 = arith.constant 144 : index
    %c0_58 = arith.constant 0 : index
    %111 = vector.load %arg2[%c144_57, %c0_58] : memref<288x128xbf16, #tpu.memory_space<vmem>>, vector<8x128xbf16>
    %112 = arith.extf %111 : vector<8x128xbf16> to vector<8x128xf32>
    %113 = arith.mulf %110, %112 : vector<8x128xf32>
    %114 = arith.addf %108, %113 : vector<8x128xf32>
    %c152 = arith.constant 152 : index
    %c0_59 = arith.constant 0 : index
    %115 = vector.load %arg1[%c152, %c0_59] : memref<288x128xbf16, #tpu.memory_space<vmem>>, vector<8x128xbf16>
    %116 = arith.extf %115 : vector<8x128xbf16> to vector<8x128xf32>
    %c152_60 = arith.constant 152 : index
    %c0_61 = arith.constant 0 : index
    %117 = vector.load %arg2[%c152_60, %c0_61] : memref<288x128xbf16, #tpu.memory_space<vmem>>, vector<8x128xbf16>
    %118 = arith.extf %117 : vector<8x128xbf16> to vector<8x128xf32>
    %119 = arith.mulf %116, %118 : vector<8x128xf32>
    %120 = arith.addf %114, %119 : vector<8x128xf32>
    %c160 = arith.constant 160 : index
    %c0_62 = arith.constant 0 : index
    %121 = vector.load %arg1[%c160, %c0_62] : memref<288x128xbf16, #tpu.memory_space<vmem>>, vector<8x128xbf16>
    %122 = arith.extf %121 : vector<8x128xbf16> to vector<8x128xf32>
    %c160_63 = arith.constant 160 : index
    %c0_64 = arith.constant 0 : index
    %123 = vector.load %arg2[%c160_63, %c0_64] : memref<288x128xbf16, #tpu.memory_space<vmem>>, vector<8x128xbf16>
    %124 = arith.extf %123 : vector<8x128xbf16> to vector<8x128xf32>
    %125 = arith.mulf %122, %124 : vector<8x128xf32>
    %126 = arith.addf %120, %125 : vector<8x128xf32>
    %c168 = arith.constant 168 : index
    %c0_65 = arith.constant 0 : index
    %127 = vector.load %arg1[%c168, %c0_65] : memref<288x128xbf16, #tpu.memory_space<vmem>>, vector<8x128xbf16>
    %128 = arith.extf %127 : vector<8x128xbf16> to vector<8x128xf32>
    %c168_66 = arith.constant 168 : index
    %c0_67 = arith.constant 0 : index
    %129 = vector.load %arg2[%c168_66, %c0_67] : memref<288x128xbf16, #tpu.memory_space<vmem>>, vector<8x128xbf16>
    %130 = arith.extf %129 : vector<8x128xbf16> to vector<8x128xf32>
    %131 = arith.mulf %128, %130 : vector<8x128xf32>
    %132 = arith.addf %126, %131 : vector<8x128xf32>
    %c176 = arith.constant 176 : index
    %c0_68 = arith.constant 0 : index
    %133 = vector.load %arg1[%c176, %c0_68] : memref<288x128xbf16, #tpu.memory_space<vmem>>, vector<8x128xbf16>
    %134 = arith.extf %133 : vector<8x128xbf16> to vector<8x128xf32>
    %c176_69 = arith.constant 176 : index
    %c0_70 = arith.constant 0 : index
    %135 = vector.load %arg2[%c176_69, %c0_70] : memref<288x128xbf16, #tpu.memory_space<vmem>>, vector<8x128xbf16>
    %136 = arith.extf %135 : vector<8x128xbf16> to vector<8x128xf32>
    %137 = arith.mulf %134, %136 : vector<8x128xf32>
    %138 = arith.addf %132, %137 : vector<8x128xf32>
    %c184 = arith.constant 184 : index
    %c0_71 = arith.constant 0 : index
    %139 = vector.load %arg1[%c184, %c0_71] : memref<288x128xbf16, #tpu.memory_space<vmem>>, vector<8x128xbf16>
    %140 = arith.extf %139 : vector<8x128xbf16> to vector<8x128xf32>
    %c184_72 = arith.constant 184 : index
    %c0_73 = arith.constant 0 : index
    %141 = vector.load %arg2[%c184_72, %c0_73] : memref<288x128xbf16, #tpu.memory_space<vmem>>, vector<8x128xbf16>
    %142 = arith.extf %141 : vector<8x128xbf16> to vector<8x128xf32>
    %143 = arith.mulf %140, %142 : vector<8x128xf32>
    %144 = arith.addf %138, %143 : vector<8x128xf32>
    %c192 = arith.constant 192 : index
    %c0_74 = arith.constant 0 : index
    %145 = vector.load %arg1[%c192, %c0_74] : memref<288x128xbf16, #tpu.memory_space<vmem>>, vector<8x128xbf16>
    %146 = arith.extf %145 : vector<8x128xbf16> to vector<8x128xf32>
    %c192_75 = arith.constant 192 : index
    %c0_76 = arith.constant 0 : index
    %147 = vector.load %arg2[%c192_75, %c0_76] : memref<288x128xbf16, #tpu.memory_space<vmem>>, vector<8x128xbf16>
    %148 = arith.extf %147 : vector<8x128xbf16> to vector<8x128xf32>
    %149 = arith.mulf %146, %148 : vector<8x128xf32>
    %150 = arith.addf %144, %149 : vector<8x128xf32>
    %c200 = arith.constant 200 : index
    %c0_77 = arith.constant 0 : index
    %151 = vector.load %arg1[%c200, %c0_77] : memref<288x128xbf16, #tpu.memory_space<vmem>>, vector<8x128xbf16>
    %152 = arith.extf %151 : vector<8x128xbf16> to vector<8x128xf32>
    %c200_78 = arith.constant 200 : index
    %c0_79 = arith.constant 0 : index
    %153 = vector.load %arg2[%c200_78, %c0_79] : memref<288x128xbf16, #tpu.memory_space<vmem>>, vector<8x128xbf16>
    %154 = arith.extf %153 : vector<8x128xbf16> to vector<8x128xf32>
    %155 = arith.mulf %152, %154 : vector<8x128xf32>
    %156 = arith.addf %150, %155 : vector<8x128xf32>
    %c208 = arith.constant 208 : index
    %c0_80 = arith.constant 0 : index
    %157 = vector.load %arg1[%c208, %c0_80] : memref<288x128xbf16, #tpu.memory_space<vmem>>, vector<8x128xbf16>
    %158 = arith.extf %157 : vector<8x128xbf16> to vector<8x128xf32>
    %c208_81 = arith.constant 208 : index
    %c0_82 = arith.constant 0 : index
    %159 = vector.load %arg2[%c208_81, %c0_82] : memref<288x128xbf16, #tpu.memory_space<vmem>>, vector<8x128xbf16>
    %160 = arith.extf %159 : vector<8x128xbf16> to vector<8x128xf32>
    %161 = arith.mulf %158, %160 : vector<8x128xf32>
    %162 = arith.addf %156, %161 : vector<8x128xf32>
    %c216 = arith.constant 216 : index
    %c0_83 = arith.constant 0 : index
    %163 = vector.load %arg1[%c216, %c0_83] : memref<288x128xbf16, #tpu.memory_space<vmem>>, vector<8x128xbf16>
    %164 = arith.extf %163 : vector<8x128xbf16> to vector<8x128xf32>
    %c216_84 = arith.constant 216 : index
    %c0_85 = arith.constant 0 : index
    %165 = vector.load %arg2[%c216_84, %c0_85] : memref<288x128xbf16, #tpu.memory_space<vmem>>, vector<8x128xbf16>
    %166 = arith.extf %165 : vector<8x128xbf16> to vector<8x128xf32>
    %167 = arith.mulf %164, %166 : vector<8x128xf32>
    %168 = arith.addf %162, %167 : vector<8x128xf32>
    %c224 = arith.constant 224 : index
    %c0_86 = arith.constant 0 : index
    %169 = vector.load %arg1[%c224, %c0_86] : memref<288x128xbf16, #tpu.memory_space<vmem>>, vector<8x128xbf16>
    %170 = arith.extf %169 : vector<8x128xbf16> to vector<8x128xf32>
    %c224_87 = arith.constant 224 : index
    %c0_88 = arith.constant 0 : index
    %171 = vector.load %arg2[%c224_87, %c0_88] : memref<288x128xbf16, #tpu.memory_space<vmem>>, vector<8x128xbf16>
    %172 = arith.extf %171 : vector<8x128xbf16> to vector<8x128xf32>
    %173 = arith.mulf %170, %172 : vector<8x128xf32>
    %174 = arith.addf %168, %173 : vector<8x128xf32>
    %c232 = arith.constant 232 : index
    %c0_89 = arith.constant 0 : index
    %175 = vector.load %arg1[%c232, %c0_89] : memref<288x128xbf16, #tpu.memory_space<vmem>>, vector<8x128xbf16>
    %176 = arith.extf %175 : vector<8x128xbf16> to vector<8x128xf32>
    %c232_90 = arith.constant 232 : index
    %c0_91 = arith.constant 0 : index
    %177 = vector.load %arg2[%c232_90, %c0_91] : memref<288x128xbf16, #tpu.memory_space<vmem>>, vector<8x128xbf16>
    %178 = arith.extf %177 : vector<8x128xbf16> to vector<8x128xf32>
    %179 = arith.mulf %176, %178 : vector<8x128xf32>
    %180 = arith.addf %174, %179 : vector<8x128xf32>
    %c240 = arith.constant 240 : index
    %c0_92 = arith.constant 0 : index
    %181 = vector.load %arg1[%c240, %c0_92] : memref<288x128xbf16, #tpu.memory_space<vmem>>, vector<8x128xbf16>
    %182 = arith.extf %181 : vector<8x128xbf16> to vector<8x128xf32>
    %c240_93 = arith.constant 240 : index
    %c0_94 = arith.constant 0 : index
    %183 = vector.load %arg2[%c240_93, %c0_94] : memref<288x128xbf16, #tpu.memory_space<vmem>>, vector<8x128xbf16>
    %184 = arith.extf %183 : vector<8x128xbf16> to vector<8x128xf32>
    %185 = arith.mulf %182, %184 : vector<8x128xf32>
    %186 = arith.addf %180, %185 : vector<8x128xf32>
    %c248 = arith.constant 248 : index
    %c0_95 = arith.constant 0 : index
    %187 = vector.load %arg1[%c248, %c0_95] : memref<288x128xbf16, #tpu.memory_space<vmem>>, vector<8x128xbf16>
    %188 = arith.extf %187 : vector<8x128xbf16> to vector<8x128xf32>
    %c248_96 = arith.constant 248 : index
    %c0_97 = arith.constant 0 : index
    %189 = vector.load %arg2[%c248_96, %c0_97] : memref<288x128xbf16, #tpu.memory_space<vmem>>, vector<8x128xbf16>
    %190 = arith.extf %189 : vector<8x128xbf16> to vector<8x128xf32>
    %191 = arith.mulf %188, %190 : vector<8x128xf32>
    %192 = arith.addf %186, %191 : vector<8x128xf32>
    %c256 = arith.constant 256 : index
    %c0_98 = arith.constant 0 : index
    %193 = vector.load %arg1[%c256, %c0_98] : memref<288x128xbf16, #tpu.memory_space<vmem>>, vector<8x128xbf16>
    %194 = arith.extf %193 : vector<8x128xbf16> to vector<8x128xf32>
    %c256_99 = arith.constant 256 : index
    %c0_100 = arith.constant 0 : index
    %195 = vector.load %arg2[%c256_99, %c0_100] : memref<288x128xbf16, #tpu.memory_space<vmem>>, vector<8x128xbf16>
    %196 = arith.extf %195 : vector<8x128xbf16> to vector<8x128xf32>
    %197 = arith.mulf %194, %196 : vector<8x128xf32>
    %198 = arith.addf %192, %197 : vector<8x128xf32>
    %c264 = arith.constant 264 : index
    %c0_101 = arith.constant 0 : index
    %199 = vector.load %arg1[%c264, %c0_101] : memref<288x128xbf16, #tpu.memory_space<vmem>>, vector<8x128xbf16>
    %200 = arith.extf %199 : vector<8x128xbf16> to vector<8x128xf32>
    %c264_102 = arith.constant 264 : index
    %c0_103 = arith.constant 0 : index
    %201 = vector.load %arg2[%c264_102, %c0_103] : memref<288x128xbf16, #tpu.memory_space<vmem>>, vector<8x128xbf16>
    %202 = arith.extf %201 : vector<8x128xbf16> to vector<8x128xf32>
    %203 = arith.mulf %200, %202 : vector<8x128xf32>
    %204 = arith.addf %198, %203 : vector<8x128xf32>
    %c272 = arith.constant 272 : index
    %c0_104 = arith.constant 0 : index
    %205 = vector.load %arg1[%c272, %c0_104] : memref<288x128xbf16, #tpu.memory_space<vmem>>, vector<8x128xbf16>
    %206 = arith.extf %205 : vector<8x128xbf16> to vector<8x128xf32>
    %c272_105 = arith.constant 272 : index
    %c0_106 = arith.constant 0 : index
    %207 = vector.load %arg2[%c272_105, %c0_106] : memref<288x128xbf16, #tpu.memory_space<vmem>>, vector<8x128xbf16>
    %208 = arith.extf %207 : vector<8x128xbf16> to vector<8x128xf32>
    %209 = arith.mulf %206, %208 : vector<8x128xf32>
    %210 = arith.addf %204, %209 : vector<8x128xf32>
    %c280 = arith.constant 280 : index
    %c0_107 = arith.constant 0 : index
    %211 = vector.load %arg1[%c280, %c0_107] : memref<288x128xbf16, #tpu.memory_space<vmem>>, vector<8x128xbf16>
    %212 = arith.extf %211 : vector<8x128xbf16> to vector<8x128xf32>
    %c280_108 = arith.constant 280 : index
    %c0_109 = arith.constant 0 : index
    %213 = vector.load %arg2[%c280_108, %c0_109] : memref<288x128xbf16, #tpu.memory_space<vmem>>, vector<8x128xbf16>
    %214 = arith.extf %213 : vector<8x128xbf16> to vector<8x128xf32>
    %215 = arith.mulf %212, %214 : vector<8x128xf32>
    %216 = arith.addf %210, %215 : vector<8x128xf32>
    %217 = arith.mulf %216, %216 : vector<8x128xf32>
    %cst = arith.constant dense<0.000000e+00> : vector<128xf32>
    %218 = vector.multi_reduction <add>, %217, %cst [0] : vector<8x128xf32> to vector<128xf32>
    %219 = vector.shape_cast %218 : vector<128xf32> to vector<1x128xf32>
    %cst_110 = arith.constant 1.000000e+00 : f32
    %220 = vector.broadcast %cst_110 : f32 to vector<1x128xf32>
    %221 = arith.addf %220, %219 : vector<1x128xf32>
    %222 = math.sqrt %219 : vector<1x128xf32>
    %cst_111 = arith.constant 9.99999993E-9 : f32
    %223 = vector.broadcast %cst_111 : f32 to vector<1x128xf32>
    %224 = arith.addf %222, %223 : vector<1x128xf32>
    %225 = arith.mulf %221, %224 : vector<1x128xf32>
    %226 = tpu.reciprocal %225 {approx = true} : vector<1x128xf32> -> vector<1x128xf32>
    %227 = arith.mulf %219, %226 : vector<1x128xf32>
    %228 = vector.broadcast %227 : vector<1x128xf32> to vector<8x128xf32>
    %229 = arith.mulf %228, %216 : vector<8x128xf32>
    %c0_112 = arith.constant 0 : index
    %c0_113 = arith.constant 0 : index
    %230 = vector.load %arg4[%c0_112, %c0_113] : memref<8x128xf32, #tpu.memory_space<vmem>>, vector<8x128xf32>
    tpu.vector_store %arg4[%c0_112, %c0_113], %229 {strides = array<i32>} : memref<8x128xf32, #tpu.memory_space<vmem>>, vector<8x128xf32>,
    return
  }
  func.func @transform_0(%arg0: i32) -> (i32, i32) {
    %c0_i32 = arith.constant 0 : i32
    %c0_i32_0 = arith.constant 0 : i32
    %c0_i32_1 = arith.constant 0 : i32
    return %c0_i32, %c0_i32_0 : i32, i32
  }
  func.func @transform_1(%arg0: i32) -> (i32, i32) {
    %c0_i32 = arith.constant 0 : i32
    %c0_i32_0 = arith.constant 0 : i32
    %c0_i32_1 = arith.constant 0 : i32
    return %c0_i32, %c0_i32_0 : i32, i32
  }
  func.func @transform_2(%arg0: i32) -> (i32, i32) {
    %c0_i32 = arith.constant 0 : i32
    %c0_i32_0 = arith.constant 0 : i32
    %c0_i32_1 = arith.constant 0 : i32
    return %c0_i32, %c0_i32_0 : i32, i32
  }
  func.func @transform_3(%arg0: i32) -> (i32, i32) {
    %c0_i32 = arith.constant 0 : i32
    %c0_i32_0 = arith.constant 0 : i32
    %c0_i32_1 = arith.constant 0 : i32
    return %c0_i32, %c0_i32_0 : i32, i32
  }
}

</mosaic_0001>

<llo_original>
// kernel: forward.1
$region0: #{forward.1}
  #allocation0 [shape = 'u32[]', space=smem, size = 0x4, offset = 0x4, fixed_abs, tag = 'smem constant byte address 0x4 - core index']
  #allocation1 [shape = 'u32[72,128]{1,0:T(1,128)}', space=vmem, size = 0x9000, scoped, tag = 'internal scratch']
  %s0 = inlined_call_operand.vmem [shape: bf16[288,128], index: 0, kind: input, shape index: {}]
  %s1 = inlined_call_operand.vmem [shape: bf16[288,128], index: 1, kind: input, shape index: {}]
  %s2 = inlined_call_operand.vmem [shape: f32[8,128], index: 2, kind: input, shape index: {}]
  %s3 = inlined_call_operand.vmem [shape: f32[8,128], index: 3, kind: output, shape index: {}]
  %s4 = sld [smem:[#allocation0]]
  $region22: #{forward.1} parent=0
    _
  %s6 = ssub.s32 1, %s4
  %s7 = scalar_select 0, %s6, %s4
  // Predicated region
  $region2: #{forward.1} parent=0 // pred_check
    _
  $region3: #{forward.1} parent=0 // pred_check_branch
    %9 = sbr.rel (0) target = $region5
  $region4: #{forward.1} parent=0 // pred_region
    _
  $region5: #{forward.1} parent=0 // pred_fallthru
    _
  // Predicated region
  $region6: #{forward.1} parent=0 // pred_check
    _
  $region7: #{forward.1} parent=0 // pred_check_branch
    %11 = sbr.rel (0) target = $region9
  $region8: #{forward.1} parent=0 // pred_region
    _
  $region9: #{forward.1} parent=0 // pred_fallthru
    _
  // Predicated region
  $region10: #{forward.1} parent=0 // pred_check
    _
  $region11: #{forward.1} parent=0 // pred_check_branch
    %13 = sbr.rel (0) target = $region13
  $region12: #{forward.1} parent=0 // pred_region
    _
  $region13: #{forward.1} parent=0 // pred_fallthru
    _
  %v14 = vld [vmem:[%s2] sm:$0xff]
  %v15 = vld [vmem:[%s0] sm:$0xf]
  %v16 = vunpack.c.l.bf16 %v15
  %v17 = vld [vmem:[%s1] sm:$0xf]
  %v18 = vunpack.c.l.bf16 %v17
  %v19 = vmul.f32 %v16, %v18
  %v20 = vadd.f32 %v14, %v19
  %v21 = vld [vmem:[%s0 + $0x4] sm:$0xf]
  %v22 = vunpack.c.l.bf16 %v21
  %v23 = vld [vmem:[%s1 + $0x4] sm:$0xf]
  %v24 = vunpack.c.l.bf16 %v23
  %v25 = vmul.f32 %v22, %v24
  %v26 = vadd.f32 %v20, %v25
  %v27 = vld [vmem:[%s0 + $0x8] sm:$0xf]
  %v28 = vunpack.c.l.bf16 %v27
  %v29 = vld [vmem:[%s1 + $0x8] sm:$0xf]
  %v30 = vunpack.c.l.bf16 %v29
  %v31 = vmul.f32 %v28, %v30
  %v32 = vadd.f32 %v26, %v31
  %v33 = vld [vmem:[%s0 + $0xc] sm:$0xf]
  %v34 = vunpack.c.l.bf16 %v33
  %v35 = vld [vmem:[%s1 + $0xc] sm:$0xf]
  %v36 = vunpack.c.l.bf16 %v35
  %v37 = vmul.f32 %v34, %v36
  %v38 = vadd.f32 %v32, %v37
  %v39 = vld [vmem:[%s0 + $0x10] sm:$0xf]
  %v40 = vunpack.c.l.bf16 %v39
  %v41 = vld [vmem:[%s1 + $0x10] sm:$0xf]
  %v42 = vunpack.c.l.bf16 %v41
  %v43 = vmul.f32 %v40, %v42
  %v44 = vadd.f32 %v38, %v43
  %v45 = vld [vmem:[%s0 + $0x14] sm:$0xf]
  %v46 = vunpack.c.l.bf16 %v45
  %v47 = vld [vmem:[%s1 + $0x14] sm:$0xf]
  %v48 = vunpack.c.l.bf16 %v47
  %v49 = vmul.f32 %v46, %v48
  %v50 = vadd.f32 %v44, %v49
  %v51 = vld [vmem:[%s0 + $0x18] sm:$0xf]
  %v52 = vunpack.c.l.bf16 %v51
  %v53 = vld [vmem:[%s1 + $0x18] sm:$0xf]
  %v54 = vunpack.c.l.bf16 %v53
  %v55 = vmul.f32 %v52, %v54
  %v56 = vadd.f32 %v50, %v55
  %v57 = vld [vmem:[%s0 + $0x1c] sm:$0xf]
  %v58 = vunpack.c.l.bf16 %v57
  %v59 = vld [vmem:[%s1 + $0x1c] sm:$0xf]
  %v60 = vunpack.c.l.bf16 %v59
  %v61 = vmul.f32 %v58, %v60
  %v62 = vadd.f32 %v56, %v61
  %v63 = vld [vmem:[%s0 + $0x20] sm:$0xf]
  %v64 = vunpack.c.l.bf16 %v63
  %v65 = vld [vmem:[%s1 + $0x20] sm:$0xf]
  %v66 = vunpack.c.l.bf16 %v65
  %v67 = vmul.f32 %v64, %v66
  %v68 = vadd.f32 %v62, %v67
  %v69 = vld [vmem:[%s0 + $0x24] sm:$0xf]
  %v70 = vunpack.c.l.bf16 %v69
  %v71 = vld [vmem:[%s1 + $0x24] sm:$0xf]
  %v72 = vunpack.c.l.bf16 %v71
  %v73 = vmul.f32 %v70, %v72
  %v74 = vadd.f32 %v68, %v73
  %v75 = vld [vmem:[%s0 + $0x28] sm:$0xf]
  %v76 = vunpack.c.l.bf16 %v75
  %v77 = vld [vmem:[%s1 + $0x28] sm:$0xf]
  %v78 = vunpack.c.l.bf16 %v77
  %v79 = vmul.f32 %v76, %v78
  %v80 = vadd.f32 %v74, %v79
  %v81 = vld [vmem:[%s0 + $0x2c] sm:$0xf]
  %v82 = vunpack.c.l.bf16 %v81
  %v83 = vld [vmem:[%s1 + $0x2c] sm:$0xf]
  %v84 = vunpack.c.l.bf16 %v83
  %v85 = vmul.f32 %v82, %v84
  %v86 = vadd.f32 %v80, %v85
  %v87 = vld [vmem:[%s0 + $0x30] sm:$0xf]
  %v88 = vunpack.c.l.bf16 %v87
  %v89 = vld [vmem:[%s1 + $0x30] sm:$0xf]
  %v90 = vunpack.c.l.bf16 %v89
  %v91 = vmul.f32 %v88, %v90
  %v92 = vadd.f32 %v86, %v91
  %v93 = vld [vmem:[%s0 + $0x34] sm:$0xf]
  %v94 = vunpack.c.l.bf16 %v93
  %v95 = vld [vmem:[%s1 + $0x34] sm:$0xf]
  %v96 = vunpack.c.l.bf16 %v95
  %v97 = vmul.f32 %v94, %v96
  %v98 = vadd.f32 %v92, %v97
  %v99 = vld [vmem:[%s0 + $0x38] sm:$0xf]
  %v100 = vunpack.c.l.bf16 %v99
  %v101 = vld [vmem:[%s1 + $0x38] sm:$0xf]
  %v102 = vunpack.c.l.bf16 %v101
  %v103 = vmul.f32 %v100, %v102
  %v104 = vadd.f32 %v98, %v103
  %v105 = vld [vmem:[%s0 + $0x3c] sm:$0xf]
  %v106 = vunpack.c.l.bf16 %v105
  %v107 = vld [vmem:[%s1 + $0x3c] sm:$0xf]
  %v108 = vunpack.c.l.bf16 %v107
  %v109 = vmul.f32 %v106, %v108
  %v110 = vadd.f32 %v104, %v109
  %v111 = vld [vmem:[%s0 + $0x40] sm:$0xf]
  %v112 = vunpack.c.l.bf16 %v111
  %v113 = vld [vmem:[%s1 + $0x40] sm:$0xf]
  %v114 = vunpack.c.l.bf16 %v113
  %v115 = vmul.f32 %v112, %v114
  %v116 = vadd.f32 %v110, %v115
  %v117 = vld [vmem:[%s0 + $0x44] sm:$0xf]
  %v118 = vunpack.c.l.bf16 %v117
  %v119 = vld [vmem:[%s1 + $0x44] sm:$0xf]
  %v120 = vunpack.c.l.bf16 %v119
  %v121 = vmul.f32 %v118, %v120
  %v122 = vadd.f32 %v116, %v121
  %v123 = vld [vmem:[%s0 + $0x48] sm:$0xf]
  %v124 = vunpack.c.l.bf16 %v123
  %v125 = vld [vmem:[%s1 + $0x48] sm:$0xf]
  %v126 = vunpack.c.l.bf16 %v125
  %v127 = vmul.f32 %v124, %v126
  %v128 = vadd.f32 %v122, %v127
  %v129 = vld [vmem:[%s0 + $0x4c] sm:$0xf]
  %v130 = vunpack.c.l.bf16 %v129
  %v131 = vld [vmem:[%s1 + $0x4c] sm:$0xf]
  %v132 = vunpack.c.l.bf16 %v131
  %v133 = vmul.f32 %v130, %v132
  %v134 = vadd.f32 %v128, %v133
  %v135 = vld [vmem:[%s0 + $0x50] sm:$0xf]
  %v136 = vunpack.c.l.bf16 %v135
  %v137 = vld [vmem:[%s1 + $0x50] sm:$0xf]
  %v138 = vunpack.c.l.bf16 %v137
  %v139 = vmul.f32 %v136, %v138
  %v140 = vadd.f32 %v134, %v139
  %v141 = vld [vmem:[%s0 + $0x54] sm:$0xf]
  %v142 = vunpack.c.l.bf16 %v141
  %v143 = vld [vmem:[%s1 + $0x54] sm:$0xf]
  %v144 = vunpack.c.l.bf16 %v143
  %v145 = vmul.f32 %v142, %v144
  %v146 = vadd.f32 %v140, %v145
  %v147 = vld [vmem:[%s0 + $0x58] sm:$0xf]
  %v148 = vunpack.c.l.bf16 %v147
  %v149 = vld [vmem:[%s1 + $0x58] sm:$0xf]
  %v150 = vunpack.c.l.bf16 %v149
  %v151 = vmul.f32 %v148, %v150
  %v152 = vadd.f32 %v146, %v151
  %v153 = vld [vmem:[%s0 + $0x5c] sm:$0xf]
  %v154 = vunpack.c.l.bf16 %v153
  %v155 = vld [vmem:[%s1 + $0x5c] sm:$0xf]
  %v156 = vunpack.c.l.bf16 %v155
  %v157 = vmul.f32 %v154, %v156
  %v158 = vadd.f32 %v152, %v157
  %v159 = vld [vmem:[%s0 + $0x60] sm:$0xf]
  %v160 = vunpack.c.l.bf16 %v159
  %v161 = vld [vmem:[%s1 + $0x60] sm:$0xf]
  %v162 = vunpack.c.l.bf16 %v161
  %v163 = vmul.f32 %v160, %v162
  %v164 = vadd.f32 %v158, %v163
  %v165 = vld [vmem:[%s0 + $0x64] sm:$0xf]
  %v166 = vunpack.c.l.bf16 %v165
  %v167 = vld [vmem:[%s1 + $0x64] sm:$0xf]
  %v168 = vunpack.c.l.bf16 %v167
  %v169 = vmul.f32 %v166, %v168
  %v170 = vadd.f32 %v164, %v169
  %v171 = vld [vmem:[%s0 + $0x68] sm:$0xf]
  %v172 = vunpack.c.l.bf16 %v171
  %v173 = vld [vmem:[%s1 + $0x68] sm:$0xf]
  %v174 = vunpack.c.l.bf16 %v173
  %v175 = vmul.f32 %v172, %v174
  %v176 = vadd.f32 %v170, %v175
  %v177 = vld [vmem:[%s0 + $0x6c] sm:$0xf]
  %v178 = vunpack.c.l.bf16 %v177
  %v179 = vld [vmem:[%s1 + $0x6c] sm:$0xf]
  %v180 = vunpack.c.l.bf16 %v179
  %v181 = vmul.f32 %v178, %v180
  %v182 = vadd.f32 %v176, %v181
  %v183 = vld [vmem:[%s0 + $0x70] sm:$0xf]
  %v184 = vunpack.c.l.bf16 %v183
  %v185 = vld [vmem:[%s1 + $0x70] sm:$0xf]
  %v186 = vunpack.c.l.bf16 %v185
  %v187 = vmul.f32 %v184, %v186
  %v188 = vadd.f32 %v182, %v187
  %v189 = vld [vmem:[%s0 + $0x74] sm:$0xf]
  %v190 = vunpack.c.l.bf16 %v189
  %v191 = vld [vmem:[%s1 + $0x74] sm:$0xf]
  %v192 = vunpack.c.l.bf16 %v191
  %v193 = vmul.f32 %v190, %v192
  %v194 = vadd.f32 %v188, %v193
  %v195 = vld [vmem:[%s0 + $0x78] sm:$0xf]
  %v196 = vunpack.c.l.bf16 %v195
  %v197 = vld [vmem:[%s1 + $0x78] sm:$0xf]
  %v198 = vunpack.c.l.bf16 %v197
  %v199 = vmul.f32 %v196, %v198
  %v200 = vadd.f32 %v194, %v199
  %v201 = vld [vmem:[%s0 + $0x7c] sm:$0xf]
  %v202 = vunpack.c.l.bf16 %v201
  %v203 = vld [vmem:[%s1 + $0x7c] sm:$0xf]
  %v204 = vunpack.c.l.bf16 %v203
  %v205 = vmul.f32 %v202, %v204
  %v206 = vadd.f32 %v200, %v205
  %v207 = vld [vmem:[%s0 + $0x80] sm:$0xf]
  %v208 = vunpack.c.l.bf16 %v207
  %v209 = vld [vmem:[%s1 + $0x80] sm:$0xf]
  %v210 = vunpack.c.l.bf16 %v209
  %v211 = vmul.f32 %v208, %v210
  %v212 = vadd.f32 %v206, %v211
  %v213 = vld [vmem:[%s0 + $0x84] sm:$0xf]
  %v214 = vunpack.c.l.bf16 %v213
  %v215 = vld [vmem:[%s1 + $0x84] sm:$0xf]
  %v216 = vunpack.c.l.bf16 %v215
  %v217 = vmul.f32 %v214, %v216
  %v218 = vadd.f32 %v212, %v217
  %v219 = vld [vmem:[%s0 + $0x88] sm:$0xf]
  %v220 = vunpack.c.l.bf16 %v219
  %v221 = vld [vmem:[%s1 + $0x88] sm:$0xf]
  %v222 = vunpack.c.l.bf16 %v221
  %v223 = vmul.f32 %v220, %v222
  %v224 = vadd.f32 %v218, %v223
  %v225 = vld [vmem:[%s0 + $0x8c] sm:$0xf]
  %v226 = vunpack.c.l.bf16 %v225
  %v227 = vld [vmem:[%s1 + $0x8c] sm:$0xf]
  %v228 = vunpack.c.l.bf16 %v227
  %v229 = vmul.f32 %v226, %v228
  %v230 = vadd.f32 %v224, %v229
  %v231 = vmul.f32 %v230, %v230
  %v232 = vrot.slane %v231, 4
  %v233 = vadd.f32 %v231, %v232
  %v234 = vrot.slane %v233, 2
  %v235 = vadd.f32 %v233, %v234
  %v236 = vrot.slane %v235, 1
  %v237 = vadd.f32 %v235, %v236
  %v238 = vadd.f32 %v237, 1.0
  %v239 = vrsqrt.pop %v237
  %v240 = vmul.f32 %v239, %v237
  %v241 = vmul.f32 %v240, %v239
  %v242 = vmul.f32 0.5, %v241
  %v243 = vsub.f32 1.5, %v242
  %v244 = vmul.f32 %v239, %v243
  %v245 = vmul.f32 %v237, %v244
  %vm246 = vcmp.eq.f32.partialorder %v237, inf
  %v247 = vsel %vm246, %v237, %v245
  %vm248 = vcmp.eq.f32.partialorder %v237, 0.0
  %v249 = vand.u32 %v237, 2147483648
  %v250 = vsel %vm248, %v249, %v247
  %v251 = vadd.f32 %v250, 1e-08
  %v252 = vmul.f32 %v238, %v251
  %v253 = vrcp.pop %v252
  %v254 = vmul.f32 %v237, %v253
  %v255 = vmul.f32 %v254, %v230
  %256 = vst [vmem:[%s3] sm:$0xff] %v255
  // Predicated region
  $region14: #{forward.1} parent=0 // pred_check
    _
  $region15: #{forward.1} parent=0 // pred_check_branch
    %258 = sbr.rel (0) target = $region17
  $region16: #{forward.1} parent=0 // pred_region
    _
  $region17: #{forward.1} parent=0 // pred_fallthru
    _
  // Predicated region
  $region18: #{forward.1} parent=0 // pred_check
    _
  $region19: #{forward.1} parent=0 // pred_check_branch
    %260 = sbr.rel (0) target = $region21
  $region20: #{forward.1} parent=0 // pred_region
    _
  $region21: #{forward.1} parent=0 // pred_fallthru
    _

</llo_original>
